<compile_context>
chip_gen: v7x
topology: tpu7x:2x2x1
jax: 0.10.0
libtpu: 0.0.40
codegen_flags: <defaults>
</compile_context>

<pallas_src>
import math

import jax
import jax.numpy as jnp
from jax.experimental import pallas as pl
from jax.experimental.pallas import tpu as pltpu

MAX_LOG_STD = 2.0
MIN_LOG_STD = -20.0


def _round_up(x: int, m: int) -> int:
    return ((x + m - 1) // m) * m


def make_gaussian_policy_kernel(max_action: float, action_dim: int):
    """action_dim = true (unpadded) action dimension, used to mask padded lanes."""
    log_sqrt_2pi = 0.5 * math.log(2.0 * math.pi)

    def kernel(state_ref, eps_ref,
               w1_ref, b1_ref, w2_ref, b2_ref, w3_ref, b3_ref,
               logstd_ref,
               action_ref, logprob_ref):
        # --- MLP: Linear -> ReLU -> Linear -> ReLU -> Linear (mean head) ---
        x = state_ref[...]                                                    # (TB, S_pad)
        h1 = jnp.dot(x, w1_ref[...], preferred_element_type=jnp.float32) + b1_ref[...]
        h1 = jnp.maximum(h1, 0.0)                                             # (TB, H_pad)
        h2 = jnp.dot(h1, w2_ref[...], preferred_element_type=jnp.float32) + b2_ref[...]
        h2 = jnp.maximum(h2, 0.0)                                             # (TB, H_pad)
        mean = jnp.dot(h2, w3_ref[...], preferred_element_type=jnp.float32) + b3_ref[...]
        # mean: (TB, A_pad); padded lanes are exactly 0 (zero-padded weights/biases)

        # --- Gaussian policy head ---
        log_std = jnp.clip(logstd_ref[...], MIN_LOG_STD, MAX_LOG_STD)         # (1, A_pad)
        std = jnp.exp(log_std)                                                # (1, A_pad)
        # 1 / (2 * var), exact, computed once on the (1, A_pad) row (EUP slot).
        inv_two_var = 0.5 * jnp.exp(-2.0 * log_std)                           # (1, A_pad)

        # rsample: mean + std * eps ; clamp_ happens BEFORE log_prob (as in PyTorch).
        action = mean + std * eps_ref[...]                                    # (TB, A_pad)
        action = jnp.clip(action, -max_action, max_action)

        # Normal(mean, std).log_prob(action)
        diff = action - mean
        lp = -(diff * diff) * inv_two_var - log_std - log_sqrt_2pi            # (TB, A_pad)

        # Mask padded action lanes and reduce across lanes in one MXU dot:
        # (TB, A_pad) @ (A_pad, 1) with a 0/1 column.
        lane_id = jax.lax.broadcasted_iota(jnp.int32, (lp.shape[-1], 1), 0)
        mask_col = (lane_id < action_dim).astype(jnp.float32)                 # (A_pad, 1)
        log_prob = jnp.dot(lp, mask_col, preferred_element_type=jnp.float32)  # (TB, 1)

        action_ref[...] = action
        logprob_ref[...] = log_prob

    return kernel


def gaussian_policy_forward(state, eps, params, max_action):
    """state: (B, S) f32, eps: (B, A) f32 ~ N(0,1).

    Returns (action (B, A), log_prob (B, 1)) matching GaussianPolicy.forward.
    """
    w1, b1, w2, b2, w3, b3, log_std = params
    B, S = state.shape
    H = w1.shape[1]
    A = w3.shape[1]

    # Lane-dense padding of feature dims (multiples of 128).
    S_pad = _round_up(S, 128)
    H_pad = _round_up(H, 128)
    A_pad = _round_up(A, 128)

    # Batch tile: big enough to amortize per-step overhead, small enough for
    # v7x's 64 MiB VMEM with double-buffered blocks.
    TB = 256
    if B < TB:
        TB = _round_up(max(B, 1), 8)
    B_pad = _round_up(B, TB)
    grid = (B_pad // TB,)

    f32 = jnp.float32
    state_p = jnp.pad(state.astype(f32), ((0, B_pad - B), (0, S_pad - S)))
    eps_p = jnp.pad(eps.astype(f32), ((0, B_pad - B), (0, A_pad - A)))
    w1_p = jnp.pad(w1.astype(f32), ((0, S_pad - S), (0, H_pad - H)))
    b1_p = jnp.pad(b1.astype(f32).reshape(1, -1), ((0, 0), (0, H_pad - H)))
    w2_p = jnp.pad(w2.astype(f32), ((0, H_pad - H), (0, H_pad - H)))
    b2_p = jnp.pad(b2.astype(f32).reshape(1, -1), ((0, 0), (0, H_pad - H)))
    w3_p = jnp.pad(w3.astype(f32), ((0, H_pad - H), (0, A_pad - A)))
    b3_p = jnp.pad(b3.astype(f32).reshape(1, -1), ((0, 0), (0, A_pad - A)))
    logstd_p = jnp.pad(log_std.astype(f32).reshape(1, -1), ((0, 0), (0, A_pad - A)))

    def batch_spec(cols):
        return pl.BlockSpec((TB, cols), lambda i: (i, 0))

    def resident(shape):
        return pl.BlockSpec(shape, lambda i: (0, 0))

    action_p, log_prob_p = pl.pallas_call(
        make_gaussian_policy_kernel(float(max_action), A),
        out_shape=(
            jax.ShapeDtypeStruct((B_pad, A_pad), jnp.float32),
            jax.ShapeDtypeStruct((B_pad, 1), jnp.float32),
        ),
        grid=grid,
        in_specs=[
            batch_spec(S_pad),            # state
            batch_spec(A_pad),            # eps
            resident((S_pad, H_pad)),     # w1
            resident((1, H_pad)),         # b1
            resident((H_pad, H_pad)),     # w2
            resident((1, H_pad)),         # b2
            resident((H_pad, A_pad)),     # w3
            resident((1, A_pad)),         # b3
            resident((1, A_pad)),         # log_std
        ],
        out_specs=(
            batch_spec(A_pad),                        # action (lane-dense)
            pl.BlockSpec((TB, 1), lambda i: (i, 0)),  # log_prob
        ),
        compiler_params=pltpu.CompilerParams(
            dimension_semantics=("parallel",),
            vmem_limit_bytes=64 * 1024 * 1024,
        ),
    )(state_p, eps_p, w1_p, b1_p, w2_p, b2_p, w3_p, b3_p, logstd_p)

    return action_p[:B, :A], log_prob_p[:B, :]


def init_params(key, state_dim, hidden_dim, action_dim):
    """Deterministic init mimicking nn.Linear default (uniform +/- 1/sqrt(fan_in))."""
    ks = jax.random.split(key, 6)

    def lin(kw, kb, fan_in, fan_out):
        bound = 1.0 / math.sqrt(fan_in)
        w = jax.random.uniform(kw, (fan_in, fan_out), jnp.float32, -bound, bound)
        b = jax.random.uniform(kb, (fan_out,), jnp.float32, -bound, bound)
        return w, b

    w1, b1 = lin(ks[0], ks[1], state_dim, hidden_dim)
    w2, b2 = lin(ks[2], ks[3], hidden_dim, hidden_dim)
    w3, b3 = lin(ks[4], ks[5], hidden_dim, action_dim)
    log_std = jnp.zeros((action_dim,), jnp.float32)   # nn.Parameter(torch.zeros(action_dim))
    return (w1, b1, w2, b2, w3, b3, log_std)


def reference_forward(state, eps, params, max_action):
    w1, b1, w2, b2, w3, b3, log_std = params
    h1 = jnp.maximum(state @ w1 + b1, 0.0)
    h2 = jnp.maximum(h1 @ w2 + b2, 0.0)
    mean = h2 @ w3 + b3
    log_std = jnp.clip(log_std, MIN_LOG_STD, MAX_LOG_STD)
    std = jnp.exp(log_std)
    action = jnp.clip(mean + std * eps, -max_action, max_action)
    lp = -((action - mean) ** 2) / (2.0 * std * std) - log_std - 0.5 * math.log(2.0 * math.pi)
    return action, jnp.sum(lp, axis=-1, keepdims=True)


if __name__ == "__main__":
    B, STATE_DIM, HIDDEN_DIM, ACTION_DIM = 4, 16, 32, 8
    MAX_ACTION = 1.0

    key = jax.random.PRNGKey(0)
    k_state, k_eps, k_params = jax.random.split(key, 3)

    state = jax.random.normal(k_state, (B, STATE_DIM), jnp.float32)
    eps = jax.random.normal(k_eps, (B, ACTION_DIM), jnp.float32)  # reparameterization noise
    params = init_params(k_params, STATE_DIM, HIDDEN_DIM, ACTION_DIM)

    action, log_prob = gaussian_policy_forward(state, eps, params, MAX_ACTION)
    action = jax.block_until_ready(action)
    log_prob = jax.block_until_ready(log_prob)

    ref_action, ref_log_prob = reference_forward(state, eps, params, MAX_ACTION)
    assert action.shape == (B, ACTION_DIM) and log_prob.shape == (B, 1)
    assert jnp.allclose(action, ref_action, atol=1e-5, rtol=1e-5)
    assert jnp.allclose(log_prob, ref_log_prob, atol=1e-5, rtol=1e-5)

    print("KERNEL_OK")
</pallas_src>

<mosaic_0001>
module attributes {stable_mosaic.version = 11 : i64} {
  func.func @kernel(%arg0: i32, %arg1: memref<8x128xf32, #tpu.memory_space<vmem>>, %arg2: memref<8x128xf32, #tpu.memory_space<vmem>>, %arg3: memref<128x128xf32, #tpu.memory_space<vmem>>, %arg4: memref<1x128xf32, #tpu.memory_space<vmem>>, %arg5: memref<128x128xf32, #tpu.memory_space<vmem>>, %arg6: memref<1x128xf32, #tpu.memory_space<vmem>>, %arg7: memref<128x128xf32, #tpu.memory_space<vmem>>, %arg8: memref<1x128xf32, #tpu.memory_space<vmem>>, %arg9: memref<1x128xf32, #tpu.memory_space<vmem>>, %arg10: memref<8x128xf32, #tpu.memory_space<vmem>>, %arg11: memref<8x1xf32, #tpu.memory_space<vmem>>) attributes {dimension_semantics = [#tpu.dimension_semantics<parallel>], iteration_bounds = array<i64: 1>, scalar_prefetch = 0 : i64, scratch_operands = 0 : i64, tpu.core_type = #tpu.core_type<tc>, window_params = [{transform_indices = @transform_0, window_bounds = array<i64: 8, 128>}, {transform_indices = @transform_1, window_bounds = array<i64: 8, 128>}, {pipeline_mode = #tpu.pipeline_mode<synchronous>, transform_indices = @transform_2, window_bounds = array<i64: 128, 128>}, {pipeline_mode = #tpu.pipeline_mode<synchronous>, transform_indices = @transform_3, window_bounds = array<i64: 1, 128>}, {pipeline_mode = #tpu.pipeline_mode<synchronous>, transform_indices = @transform_4, window_bounds = array<i64: 128, 128>}, {pipeline_mode = #tpu.pipeline_mode<synchronous>, transform_indices = @transform_5, window_bounds = array<i64: 1, 128>}, {pipeline_mode = #tpu.pipeline_mode<synchronous>, transform_indices = @transform_6, window_bounds = array<i64: 128, 128>}, {pipeline_mode = #tpu.pipeline_mode<synchronous>, transform_indices = @transform_7, window_bounds = array<i64: 1, 128>}, {pipeline_mode = #tpu.pipeline_mode<synchronous>, transform_indices = @transform_8, window_bounds = array<i64: 1, 128>}, {transform_indices = @transform_9, window_bounds = array<i64: 8, 128>}, {transform_indices = @transform_10, window_bounds = array<i64: 8, 1>}]} {
    %c0 = arith.constant 0 : index
    %c0_0 = arith.constant 0 : index
    %0 = vector.load %arg1[%c0, %c0_0] : memref<8x128xf32, #tpu.memory_space<vmem>>, vector<8x128xf32>
    %c0_1 = arith.constant 0 : index
    %c0_2 = arith.constant 0 : index
    %1 = vector.load %arg3[%c0_1, %c0_2] : memref<128x128xf32, #tpu.memory_space<vmem>>, vector<128x128xf32>
    %cst = arith.constant dense<0.000000e+00> : vector<8x128xf32>
    %2 = tpu.matmul %0, %1, %cst {dimension_numbers = #tpu.dot_dimension_numbers<[1], [0], [0], [1], [0, 0, 1, 1], [], []>} : vector<8x128xf32>, vector<128x128xf32>, vector<8x128xf32> -> vector<8x128xf32>
    %c0_3 = arith.constant 0 : index
    %c0_4 = arith.constant 0 : index
    %3 = vector.load %arg4[%c0_3, %c0_4] : memref<1x128xf32, #tpu.memory_space<vmem>>, vector<1x128xf32>
    %4 = vector.broadcast %3 : vector<1x128xf32> to vector<8x128xf32>
    %5 = arith.addf %2, %4 : vector<8x128xf32>
    %cst_5 = arith.constant 0.000000e+00 : f32
    %6 = vector.broadcast %cst_5 : f32 to vector<8x128xf32>
    %7 = arith.maximumf %5, %6 : vector<8x128xf32>
    %c0_6 = arith.constant 0 : index
    %c0_7 = arith.constant 0 : index
    %8 = vector.load %arg5[%c0_6, %c0_7] : memref<128x128xf32, #tpu.memory_space<vmem>>, vector<128x128xf32>
    %cst_8 = arith.constant dense<0.000000e+00> : vector<8x128xf32>
    %9 = tpu.matmul %7, %8, %cst_8 {dimension_numbers = #tpu.dot_dimension_numbers<[1], [0], [0], [1], [0, 0, 1, 1], [], []>} : vector<8x128xf32>, vector<128x128xf32>, vector<8x128xf32> -> vector<8x128xf32>
    %c0_9 = arith.constant 0 : index
    %c0_10 = arith.constant 0 : index
    %10 = vector.load %arg6[%c0_9, %c0_10] : memref<1x128xf32, #tpu.memory_space<vmem>>, vector<1x128xf32>
    %11 = vector.broadcast %10 : vector<1x128xf32> to vector<8x128xf32>
    %12 = arith.addf %9, %11 : vector<8x128xf32>
    %cst_11 = arith.constant 0.000000e+00 : f32
    %13 = vector.broadcast %cst_11 : f32 to vector<8x128xf32>
    %14 = arith.maximumf %12, %13 : vector<8x128xf32>
    %c0_12 = arith.constant 0 : index
    %c0_13 = arith.constant 0 : index
    %15 = vector.load %arg7[%c0_12, %c0_13] : memref<128x128xf32, #tpu.memory_space<vmem>>, vector<128x128xf32>
    %cst_14 = arith.constant dense<0.000000e+00> : vector<8x128xf32>
    %16 = tpu.matmul %14, %15, %cst_14 {dimension_numbers = #tpu.dot_dimension_numbers<[1], [0], [0], [1], [0, 0, 1, 1], [], []>} : vector<8x128xf32>, vector<128x128xf32>, vector<8x128xf32> -> vector<8x128xf32>
    %c0_15 = arith.constant 0 : index
    %c0_16 = arith.constant 0 : index
    %17 = vector.load %arg8[%c0_15, %c0_16] : memref<1x128xf32, #tpu.memory_space<vmem>>, vector<1x128xf32>
    %18 = vector.broadcast %17 : vector<1x128xf32> to vector<8x128xf32>
    %19 = arith.addf %16, %18 : vector<8x128xf32>
    %c0_17 = arith.constant 0 : index
    %c0_18 = arith.constant 0 : index
    %20 = vector.load %arg9[%c0_17, %c0_18] : memref<1x128xf32, #tpu.memory_space<vmem>>, vector<1x128xf32>
    %cst_19 = arith.constant -2.000000e+01 : f32
    %cst_20 = arith.constant 2.000000e+00 : f32
    %21 = vector.broadcast %cst_19 : f32 to vector<1x128xf32>
    %22 = arith.maximumf %21, %20 : vector<1x128xf32>
    %23 = vector.broadcast %cst_20 : f32 to vector<1x128xf32>
    %24 = arith.minimumf %23, %22 : vector<1x128xf32>
    %25 = math.exp %24 : vector<1x128xf32>
    %cst_21 = arith.constant -2.000000e+00 : f32
    %26 = vector.broadcast %cst_21 : f32 to vector<1x128xf32>
    %27 = arith.mulf %26, %24 : vector<1x128xf32>
    %28 = math.exp %27 : vector<1x128xf32>
    %cst_22 = arith.constant 5.000000e-01 : f32
    %29 = vector.broadcast %cst_22 : f32 to vector<1x128xf32>
    %30 = arith.mulf %29, %28 : vector<1x128xf32>
    %c0_23 = arith.constant 0 : index
    %c0_24 = arith.constant 0 : index
    %31 = vector.load %arg2[%c0_23, %c0_24] : memref<8x128xf32, #tpu.memory_space<vmem>>, vector<8x128xf32>
    %32 = vector.broadcast %25 : vector<1x128xf32> to vector<8x128xf32>
    %33 = arith.mulf %32, %31 : vector<8x128xf32>
    %34 = arith.addf %19, %33 : vector<8x128xf32>
    %cst_25 = arith.constant -1.000000e+00 : f32
    %cst_26 = arith.constant 1.000000e+00 : f32
    %35 = vector.broadcast %cst_25 : f32 to vector<8x128xf32>
    %36 = arith.maximumf %35, %34 : vector<8x128xf32>
    %37 = vector.broadcast %cst_26 : f32 to vector<8x128xf32>
    %38 = arith.minimumf %37, %36 : vector<8x128xf32>
    %39 = arith.subf %38, %19 : vector<8x128xf32>
    %40 = arith.mulf %39, %39 : vector<8x128xf32>
    %cst_27 = arith.constant 0.000000e+00 : f32
    %41 = vector.broadcast %cst_27 : f32 to vector<8x128xf32>
    %42 = arith.subf %41, %40 : vector<8x128xf32>
    %43 = vector.broadcast %30 : vector<1x128xf32> to vector<8x128xf32>
    %44 = arith.mulf %42, %43 : vector<8x128xf32>
    %45 = vector.broadcast %24 : vector<1x128xf32> to vector<8x128xf32>
    %46 = arith.subf %44, %45 : vector<8x128xf32>
    %cst_28 = arith.constant 0.918938517 : f32
    %47 = vector.broadcast %cst_28 : f32 to vector<8x128xf32>
    %48 = arith.subf %46, %47 : vector<8x128xf32>
    %49 = tpu.iota {dimensions = array<i32: 0>} : vector<128x1xi32>
    %c8_i32 = arith.constant 8 : i32
    %50 = vector.broadcast %c8_i32 : i32 to vector<128x1xi32>
    %51 = arith.cmpi slt, %49, %50 : vector<128x1xi32>
    %52 = arith.extui %51 : vector<128x1xi1> to vector<128x1xi32>
    %53 = arith.sitofp %52 : vector<128x1xi32> to vector<128x1xf32>
    %cst_29 = arith.constant dense<0.000000e+00> : vector<8x1xf32>
    %54 = tpu.matmul %48, %53, %cst_29 {dimension_numbers = #tpu.dot_dimension_numbers<[1], [0], [0], [1], [0, 0, 1, 1], [], []>} : vector<8x128xf32>, vector<128x1xf32>, vector<8x1xf32> -> vector<8x1xf32>
    %c0_30 = arith.constant 0 : index
    %c0_31 = arith.constant 0 : index
    %55 = vector.load %arg10[%c0_30, %c0_31] : memref<8x128xf32, #tpu.memory_space<vmem>>, vector<8x128xf32>
    tpu.vector_store %arg10[%c0_30, %c0_31], %38 {strides = array<i32>} : memref<8x128xf32, #tpu.memory_space<vmem>>, vector<8x128xf32>,
    %c0_32 = arith.constant 0 : index
    %c0_33 = arith.constant 0 : index
    %56 = vector.load %arg11[%c0_32, %c0_33] : memref<8x1xf32, #tpu.memory_space<vmem>>, vector<8x1xf32>
    tpu.vector_store %arg11[%c0_32, %c0_33], %54 {strides = array<i32>} : memref<8x1xf32, #tpu.memory_space<vmem>>, vector<8x1xf32>,
    return
  }
  func.func @transform_0(%arg0: i32) -> (i32, i32) {
    %c0_i32 = arith.constant 0 : i32
    %c0_i32_0 = arith.constant 0 : i32
    return %arg0, %c0_i32 : i32, i32
  }
  func.func @transform_1(%arg0: i32) -> (i32, i32) {
    %c0_i32 = arith.constant 0 : i32
    %c0_i32_0 = arith.constant 0 : i32
    return %arg0, %c0_i32 : i32, i32
  }
  func.func @transform_2(%arg0: i32) -> (i32, i32) {
    %c0_i32 = arith.constant 0 : i32
    %c0_i32_0 = arith.constant 0 : i32
    %c0_i32_1 = arith.constant 0 : i32
    return %c0_i32, %c0_i32_0 : i32, i32
  }
  func.func @transform_3(%arg0: i32) -> (i32, i32) {
    %c0_i32 = arith.constant 0 : i32
    %c0_i32_0 = arith.constant 0 : i32
    %c0_i32_1 = arith.constant 0 : i32
    return %c0_i32, %c0_i32_0 : i32, i32
  }
  func.func @transform_4(%arg0: i32) -> (i32, i32) {
    %c0_i32 = arith.constant 0 : i32
    %c0_i32_0 = arith.constant 0 : i32
    %c0_i32_1 = arith.constant 0 : i32
    return %c0_i32, %c0_i32_0 : i32, i32
  }
  func.func @transform_5(%arg0: i32) -> (i32, i32) {
    %c0_i32 = arith.constant 0 : i32
    %c0_i32_0 = arith.constant 0 : i32
    %c0_i32_1 = arith.constant 0 : i32
    return %c0_i32, %c0_i32_0 : i32, i32
  }
  func.func @transform_6(%arg0: i32) -> (i32, i32) {
    %c0_i32 = arith.constant 0 : i32
    %c0_i32_0 = arith.constant 0 : i32
    %c0_i32_1 = arith.constant 0 : i32
    return %c0_i32, %c0_i32_0 : i32, i32
  }
  func.func @transform_7(%arg0: i32) -> (i32, i32) {
    %c0_i32 = arith.constant 0 : i32
    %c0_i32_0 = arith.constant 0 : i32
    %c0_i32_1 = arith.constant 0 : i32
    return %c0_i32, %c0_i32_0 : i32, i32
  }
  func.func @transform_8(%arg0: i32) -> (i32, i32) {
    %c0_i32 = arith.constant 0 : i32
    %c0_i32_0 = arith.constant 0 : i32
    %c0_i32_1 = arith.constant 0 : i32
    return %c0_i32, %c0_i32_0 : i32, i32
  }
  func.func @transform_9(%arg0: i32) -> (i32, i32) {
    %c0_i32 = arith.constant 0 : i32
    %c0_i32_0 = arith.constant 0 : i32
    return %arg0, %c0_i32 : i32, i32
  }
  func.func @transform_10(%arg0: i32) -> (i32, i32) {
    %c0_i32 = arith.constant 0 : i32
    %c0_i32_0 = arith.constant 0 : i32
    return %arg0, %c0_i32 : i32, i32
  }
}

</mosaic_0001>

<llo_original>
// kernel: tpu_custom_call.1
$region0: #{tpu_custom_call.1}
  #allocation0 [shape = 'u32[]', space=smem, size = 0x4, offset = 0x4, fixed_abs, tag = 'smem constant byte address 0x4 - core index']
  #allocation1 [shape = 'u32[144,128]{1,0:T(1,128)}', space=vmem, size = 0x12000, scoped, tag = 'internal scratch']
  %s0 = inlined_call_operand.hbm [shape: f32[8,128], index: 0, kind: input, shape index: {}]
  %s1 = inlined_call_operand.hbm [shape: f32[8,128], index: 1, kind: input, shape index: {}]
  %s2 = inlined_call_operand.hbm [shape: f32[128,128], index: 2, kind: input, shape index: {}]
  %s3 = inlined_call_operand.hbm [shape: f32[1,128], index: 3, kind: input, shape index: {}]
  %s4 = inlined_call_operand.hbm [shape: f32[128,128], index: 4, kind: input, shape index: {}]
  %s5 = inlined_call_operand.hbm [shape: f32[1,128], index: 5, kind: input, shape index: {}]
  %s6 = inlined_call_operand.hbm [shape: f32[128,128], index: 6, kind: input, shape index: {}]
  %s7 = inlined_call_operand.hbm [shape: f32[1,128], index: 7, kind: input, shape index: {}]
  %s8 = inlined_call_operand.hbm [shape: f32[1,128], index: 8, kind: input, shape index: {}]
  %s9 = inlined_call_operand.hbm [shape: f32[8,128], index: 9, kind: output, shape index: {0}]
  %s10 = inlined_call_operand.hbm [shape: f32[8,1], index: 10, kind: output, shape index: {1}]
  %11 = xla_tuple %s9, %s10
  %s12 = sld [smem:[#allocation0]]
  $region90: #{tpu_custom_call.1} parent=0
    _
  %s14 = ssub.s32 1, %s12
  %s15 = scalar_select 0, %s14, %s12
  $region1: #{tpu_custom_call.1} parent=0
    #allocation2 [shape = 'u8[4096]{0}', space=vmem, size = 0x1000, scoped, tag = 'input window, operand 0, single buffered']
    #allocation3 [shape = 's32[1]{0}', space=sflag, size = 0x4, scoped, tag = 'scoped memory for tpu_custom_call.1']
    #allocation4 [shape = 's32[1]{0}', space=sflag, size = 0x4, scoped, tag = 'scoped memory for tpu_custom_call.1']
    #allocation5 [shape = 'u8[4096]{0}', space=vmem, size = 0x1000, scoped, tag = 'input window, operand 1, single buffered']
    #allocation6 [shape = 's32[1]{0}', space=sflag, size = 0x4, scoped, tag = 'scoped memory for tpu_custom_call.1']
    #allocation7 [shape = 'u8[65536]{0}', space=vmem, size = 0x10000, scoped, tag = 'input window, operand 2, single buffered']
    #allocation8 [shape = 'u8[512]{0}', space=vmem, size = 0x400, scoped, tag = 'input window, operand 3, single buffered']
    #allocation9 [shape = 's32[1]{0}', space=sflag, size = 0x4, scoped, tag = 'scoped memory for tpu_custom_call.1']
    #allocation10 [shape = 'u8[65536]{0}', space=vmem, size = 0x10000, scoped, tag = 'input window, operand 4, single buffered']
    #allocation11 [shape = 'u8[512]{0}', space=vmem, size = 0x400, scoped, tag = 'input window, operand 5, single buffered']
    #allocation12 [shape = 's32[1]{0}', space=sflag, size = 0x4, scoped, tag = 'scoped memory for tpu_custom_call.1']
    #allocation13 [shape = 'u8[65536]{0}', space=vmem, size = 0x10000, scoped, tag = 'input window, operand 6, single buffered']
    #allocation14 [shape = 'u8[512]{0}', space=vmem, size = 0x400, scoped, tag = 'input window, operand 7, single buffered']
    #allocation15 [shape = 's32[1]{0}', space=sflag, size = 0x4, scoped, tag = 'scoped memory for tpu_custom_call.1']
    #allocation16 [shape = 'u8[512]{0}', space=vmem, size = 0x400, scoped, tag = 'input window, operand 8, single buffered']
    #allocation17 [shape = 'u8[4096]{0}', space=vmem, size = 0x1000, scoped, tag = 'output window, operand 0, single buffered']
    #allocation18 [shape = 'u8[4096]{0}', space=vmem, size = 0x1000, scoped, tag = 'output window, operand 1, single buffered']
    #allocation19 [shape = 's32[1]{0}', space=sflag, size = 0x4, scoped, tag = 'scoped memory for tpu_custom_call.1']
    %16 = vsyncpa [#allocation3], 0
    %17 = vsyncpa [#allocation6], 0
    %18 = vsyncpa [#allocation9], 0
    %19 = vsyncpa [#allocation12], 0
    %20 = vsyncpa [#allocation15], 0
    %21 = vsyncpa [#allocation4], 0
    %22 = vsyncpa [#allocation19], 0
    // Predicated region
    $region2: #{tpu_custom_call.1} parent=1 // pred_check
      _
    $region3: #{tpu_custom_call.1} parent=1 // pred_check_branch
      %24 = sbr.rel (0) target = $region5
    $region4: #{tpu_custom_call.1} parent=1 // pred_region
      %s26 = ssub.s32 128, 128
      %27 = vsyncadd [#allocation3], %s26
      %s29 = sshll.u32 [#allocation2], 4
      %s30 = int_to_ptr.vmem [resolvable:$true] %s29
      %32 = dma.hbm_to_vmem [thread:$0]  %s0, 128, %s30, [#allocation3]
    $region5: #{tpu_custom_call.1} parent=1 // pred_fallthru
      _
    // Predicated region
    $region6: #{tpu_custom_call.1} parent=1 // pred_check
      _
    $region7: #{tpu_custom_call.1} parent=1 // pred_check_branch
      %34 = sbr.rel (0) target = $region9
    $region8: #{tpu_custom_call.1} parent=1 // pred_region
      %s36 = ssub.s32 128, 128
      %37 = vsyncadd [#allocation6], %s36
      %s39 = sshll.u32 [#allocation5], 4
      %s40 = int_to_ptr.vmem [resolvable:$true] %s39
      %42 = dma.hbm_to_vmem [thread:$0]  %s1, 128, %s40, [#allocation6]
    $region9: #{tpu_custom_call.1} parent=1 // pred_fallthru
      _
    // Predicated region
    $region10: #{tpu_custom_call.1} parent=1 // pred_check
      _
    $region11: #{tpu_custom_call.1} parent=1 // pred_check_branch
      %44 = sbr.rel (0) target = $region13
    $region12: #{tpu_custom_call.1} parent=1 // pred_region
      %s46 = ssub.s32 2048, 2048
      %47 = vsyncadd [#allocation6], %s46
      %s48 = sshll.u32 [#allocation7], 4
      %s49 = int_to_ptr.vmem [resolvable:$true] %s48
      %54 = dma.hbm_to_vmem [thread:$0]  %s2, 2048, %s49, [#allocation6], 128, 128, 8
    $region13: #{tpu_custom_call.1} parent=1 // pred_fallthru
      _
    // Predicated region
    $region14: #{tpu_custom_call.1} parent=1 // pred_check
      _
    $region15: #{tpu_custom_call.1} parent=1 // pred_check_branch
      %56 = sbr.rel (0) target = $region17
    $region16: #{tpu_custom_call.1} parent=1 // pred_region
      %s58 = ssub.s32 16, 16
      %59 = vsyncadd [#allocation9], %s58
      %s61 = sshll.u32 [#allocation8], 4
      %s62 = int_to_ptr.vmem [resolvable:$true] %s61
      %64 = dma.hbm_to_vmem [thread:$0]  %s3, 16, %s62, [#allocation9]
    $region17: #{tpu_custom_call.1} parent=1 // pred_fallthru
      _
    // Predicated region
    $region18: #{tpu_custom_call.1} parent=1 // pred_check
      _
    $region19: #{tpu_custom_call.1} parent=1 // pred_check_branch
      %66 = sbr.rel (0) target = $region21
    $region20: #{tpu_custom_call.1} parent=1 // pred_region
      %s68 = ssub.s32 2048, 2048
      %69 = vsyncadd [#allocation9], %s68
      %s70 = sshll.u32 [#allocation10], 4
      %s71 = int_to_ptr.vmem [resolvable:$true] %s70
      %76 = dma.hbm_to_vmem [thread:$0]  %s4, 2048, %s71, [#allocation9], 128, 128, 8
    $region21: #{tpu_custom_call.1} parent=1 // pred_fallthru
      _
    // Predicated region
    $region22: #{tpu_custom_call.1} parent=1 // pred_check
      _
    $region23: #{tpu_custom_call.1} parent=1 // pred_check_branch
      %78 = sbr.rel (0) target = $region25
    $region24: #{tpu_custom_call.1} parent=1 // pred_region
      %s80 = ssub.s32 16, 16
      %81 = vsyncadd [#allocation12], %s80
      %s83 = sshll.u32 [#allocation11], 4
      %s84 = int_to_ptr.vmem [resolvable:$true] %s83
      %86 = dma.hbm_to_vmem [thread:$0]  %s5, 16, %s84, [#allocation12]
    $region25: #{tpu_custom_call.1} parent=1 // pred_fallthru
      _
    // Predicated region
    $region26: #{tpu_custom_call.1} parent=1 // pred_check
      _
    $region27: #{tpu_custom_call.1} parent=1 // pred_check_branch
      %88 = sbr.rel (0) target = $region29
    $region28: #{tpu_custom_call.1} parent=1 // pred_region
      %s90 = ssub.s32 2048, 2048
      %91 = vsyncadd [#allocation12], %s90
      %s92 = sshll.u32 [#allocation13], 4
      %s93 = int_to_ptr.vmem [resolvable:$true] %s92
      %98 = dma.hbm_to_vmem [thread:$0]  %s6, 2048, %s93, [#allocation12], 128, 128, 8
    $region29: #{tpu_custom_call.1} parent=1 // pred_fallthru
      _
    // Predicated region
    $region30: #{tpu_custom_call.1} parent=1 // pred_check
      _
    $region31: #{tpu_custom_call.1} parent=1 // pred_check_branch
      %100 = sbr.rel (0) target = $region33
    $region32: #{tpu_custom_call.1} parent=1 // pred_region
      %s102 = ssub.s32 16, 16
      %103 = vsyncadd [#allocation15], %s102
      %s105 = sshll.u32 [#allocation14], 4
      %s106 = int_to_ptr.vmem [resolvable:$true] %s105
      %108 = dma.hbm_to_vmem [thread:$0]  %s7, 16, %s106, [#allocation15]
    $region33: #{tpu_custom_call.1} parent=1 // pred_fallthru
      _
    // Predicated region
    $region34: #{tpu_custom_call.1} parent=1 // pred_check
      _
    $region35: #{tpu_custom_call.1} parent=1 // pred_check_branch
      %110 = sbr.rel (0) target = $region37
    $region36: #{tpu_custom_call.1} parent=1 // pred_region
      %s112 = ssub.s32 16, 16
      %113 = vsyncadd [#allocation15], %s112
      %s115 = sshll.u32 [#allocation16], 4
      %s116 = int_to_ptr.vmem [resolvable:$true] %s115
      %118 = dma.hbm_to_vmem [thread:$0]  %s8, 16, %s116, [#allocation15]
    $region37: #{tpu_custom_call.1} parent=1 // pred_fallthru
      _
    // Predicated region
    $region38: #{tpu_custom_call.1} parent=1 // pred_check
      _
    $region39: #{tpu_custom_call.1} parent=1 // pred_check_branch
      %120 = sbr.rel (0) target = $region41
    $region40: #{tpu_custom_call.1} parent=1 // pred_region
      %121 = dma.done [#allocation3], 128
    $region41: #{tpu_custom_call.1} parent=1 // pred_fallthru
      _
    // Predicated region
    $region42: #{tpu_custom_call.1} parent=1 // pred_check
      _
    $region43: #{tpu_custom_call.1} parent=1 // pred_check_branch
      %123 = sbr.rel (0) target = $region45
    $region44: #{tpu_custom_call.1} parent=1 // pred_region
      %124 = dma.done [#allocation6], 128
    $region45: #{tpu_custom_call.1} parent=1 // pred_fallthru
      _
    // Predicated region
    $region46: #{tpu_custom_call.1} parent=1 // pred_check
      _
    $region47: #{tpu_custom_call.1} parent=1 // pred_check_branch
      %126 = sbr.rel (0) target = $region49
    $region48: #{tpu_custom_call.1} parent=1 // pred_region
      %127 = dma.done [#allocation6], 2048
    $region49: #{tpu_custom_call.1} parent=1 // pred_fallthru
      _
    // Predicated region
    $region50: #{tpu_custom_call.1} parent=1 // pred_check
      _
    $region51: #{tpu_custom_call.1} parent=1 // pred_check_branch
      %129 = sbr.rel (0) target = $region53
    $region52: #{tpu_custom_call.1} parent=1 // pred_region
      %130 = dma.done [#allocation9], 16
    $region53: #{tpu_custom_call.1} parent=1 // pred_fallthru
      _
    // Predicated region
    $region54: #{tpu_custom_call.1} parent=1 // pred_check
      _
    $region55: #{tpu_custom_call.1} parent=1 // pred_check_branch
      %132 = sbr.rel (0) target = $region57
    $region56: #{tpu_custom_call.1} parent=1 // pred_region
      %133 = dma.done [#allocation9], 2048
    $region57: #{tpu_custom_call.1} parent=1 // pred_fallthru
      _
    // Predicated region
    $region58: #{tpu_custom_call.1} parent=1 // pred_check
      _
    $region59: #{tpu_custom_call.1} parent=1 // pred_check_branch
      %135 = sbr.rel (0) target = $region61
    $region60: #{tpu_custom_call.1} parent=1 // pred_region
      %136 = dma.done [#allocation12], 16
    $region61: #{tpu_custom_call.1} parent=1 // pred_fallthru
      _
    // Predicated region
    $region62: #{tpu_custom_call.1} parent=1 // pred_check
      _
    $region63: #{tpu_custom_call.1} parent=1 // pred_check_branch
      %138 = sbr.rel (0) target = $region65
    $region64: #{tpu_custom_call.1} parent=1 // pred_region
      %139 = dma.done [#allocation12], 2048
    $region65: #{tpu_custom_call.1} parent=1 // pred_fallthru
      _
    // Predicated region
    $region66: #{tpu_custom_call.1} parent=1 // pred_check
      _
    $region67: #{tpu_custom_call.1} parent=1 // pred_check_branch
      %141 = sbr.rel (0) target = $region69
    $region68: #{tpu_custom_call.1} parent=1 // pred_region
      %142 = dma.done [#allocation15], 16
    $region69: #{tpu_custom_call.1} parent=1 // pred_fallthru
      _
    // Predicated region
    $region70: #{tpu_custom_call.1} parent=1 // pred_check
      _
    $region71: #{tpu_custom_call.1} parent=1 // pred_check_branch
      %144 = sbr.rel (0) target = $region73
    $region72: #{tpu_custom_call.1} parent=1 // pred_region
      %145 = dma.done [#allocation15], 16
    $region73: #{tpu_custom_call.1} parent=1 // pred_fallthru
      _
    %v146 = vld [vmem:[#allocation2] sm:$0xff]
    %v147 = vld [vmem:[#allocation7] sm:$0xff]
    %v148 = vld [vmem:[#allocation7 + $0x8] sm:$0xff]
    %v149 = vld [vmem:[#allocation7 + $0x10] sm:$0xff]
    %v150 = vld [vmem:[#allocation7 + $0x18] sm:$0xff]
    %v151 = vld [vmem:[#allocation7 + $0x20] sm:$0xff]
    %v152 = vld [vmem:[#allocation7 + $0x28] sm:$0xff]
    %v153 = vld [vmem:[#allocation7 + $0x30] sm:$0xff]
    %v154 = vld [vmem:[#allocation7 + $0x38] sm:$0xff]
    %v155 = vld [vmem:[#allocation7 + $0x40] sm:$0xff]
    %v156 = vld [vmem:[#allocation7 + $0x48] sm:$0xff]
    %v157 = vld [vmem:[#allocation7 + $0x50] sm:$0xff]
    %v158 = vld [vmem:[#allocation7 + $0x58] sm:$0xff]
    %v159 = vld [vmem:[#allocation7 + $0x60] sm:$0xff]
    %v160 = vld [vmem:[#allocation7 + $0x68] sm:$0xff]
    %v161 = vld [vmem:[#allocation7 + $0x70] sm:$0xff]
    %v162 = vld [vmem:[#allocation7 + $0x78] sm:$0xff]
    %v163 = vld [vmem:[#allocation8] sm:$0x1]
    %v165 = vlaneseq
    %v166 = vshrl.u32 %v165, 7
    %v167 = vsub.s32 0, %v166
    %v168 = vrot.slane %v163, %v167
    %170 = vmatprep.subr.mxu0 0.0
    %171 = vmatpush1.msra.mxu0 %v147
    %172 = vmatprep.subr.mxu0 0.0
    %173 = vmatpush1.msra.mxu0 %v148
    %174 = vmatprep.subr.mxu0 0.0
    %175 = vmatpush1.msra.mxu0 %v149
    %176 = vmatprep.subr.mxu0 0.0
    %177 = vmatpush1.msra.mxu0 %v150
    %178 = vmatprep.subr.mxu0 0.0
    %179 = vmatpush1.msra.mxu0 %v151
    %180 = vmatprep.subr.mxu0 0.0
    %181 = vmatpush1.msra.mxu0 %v152
    %182 = vmatprep.subr.mxu0 0.0
    %183 = vmatpush1.msra.mxu0 %v153
    %184 = vmatprep.subr.mxu0 0.0
    %185 = vmatpush1.msra.mxu0 %v154
    %186 = vmatprep.subr.mxu0 0.0
    %187 = vmatpush1.msra.mxu0 %v155
    %188 = vmatprep.subr.mxu0 0.0
    %189 = vmatpush1.msra.mxu0 %v156
    %190 = vmatprep.subr.mxu0 0.0
    %191 = vmatpush1.msra.mxu0 %v157
    %192 = vmatprep.subr.mxu0 0.0
    %193 = vmatpush1.msra.mxu0 %v158
    %194 = vmatprep.subr.mxu0 0.0
    %195 = vmatpush1.msra.mxu0 %v159
    %196 = vmatprep.subr.mxu0 0.0
    %197 = vmatpush1.msra.mxu0 %v160
    %198 = vmatprep.subr.mxu0 0.0
    %199 = vmatpush1.msra.mxu0 %v161
    %200 = vmatprep.subr.mxu0 0.0
    %201 = vmatpush1.msra.mxu0 %v162
    %202 = vmatprep.subr.mxu0 0.0
    %203 = vmatpush1.msra.mxu0 0.0
    %204 = vmatprep.subr.mxu0 0.0
    %205 = vmatpush1.msra.mxu0 0.0
    %206 = vmatprep.subr.mxu0 0.0
    %207 = vmatpush1.msra.mxu0 0.0
    %208 = vmatprep.subr.mxu0 0.0
    %209 = vmatpush1.msra.mxu0 0.0
    %210 = vmatprep.subr.mxu0 0.0
    %211 = vmatpush1.msra.mxu0 0.0
    %212 = vmatprep.subr.mxu0 0.0
    %213 = vmatpush1.msra.mxu0 0.0
    %214 = vmatprep.subr.mxu0 0.0
    %215 = vmatpush1.msra.mxu0 0.0
    %216 = vmatprep.subr.mxu0 0.0
    %217 = vmatpush1.msra.mxu0 0.0
    %218 = vmatprep.subr.mxu0 0.0
    %219 = vmatpush1.msra.mxu0 0.0
    %220 = vmatprep.subr.mxu0 0.0
    %221 = vmatpush1.msra.mxu0 0.0
    %222 = vmatprep.subr.mxu0 0.0
    %223 = vmatpush1.msra.mxu0 0.0
    %224 = vmatprep.subr.mxu0 0.0
    %225 = vmatpush1.msra.mxu0 0.0
    %226 = vmatprep.subr.mxu0 0.0
    %227 = vmatpush1.msra.mxu0 0.0
    %228 = vmatprep.subr.mxu0 0.0
    %229 = vmatpush1.msra.mxu0 0.0
    %230 = vmatprep.subr.mxu0 0.0
    %231 = vmatpush1.msra.mxu0 0.0
    %232 = vmatprep.subr.mxu0 0.0
    %233 = vmatpush1.msra.mxu0 0.0
    %234 = vmatprep.mubr.f32.mxu0 0.0
    %235 = vmatmul.mubr.f32.gmra.mrb[0].mxu0 %v146
    %v236 = vpop.f32.mrb[0].mxu0
    %v237 = vadd.f32 %v168, %v236
    %v238 = vpop.f32.mrb[0].mxu0
    %239 = vdwg.mxu0
    %v240 = vmax.f32 %v237, 0.0
    %v241 = vld [vmem:[#allocation10] sm:$0xff]
    %v242 = vld [vmem:[#allocation10 + $0x8] sm:$0xff]
    %v243 = vld [vmem:[#allocation10 + $0x10] sm:$0xff]
    %v244 = vld [vmem:[#allocation10 + $0x18] sm:$0xff]
    %v245 = vld [vmem:[#allocation10 + $0x20] sm:$0xff]
    %v246 = vld [vmem:[#allocation10 + $0x28] sm:$0xff]
    %v247 = vld [vmem:[#allocation10 + $0x30] sm:$0xff]
    %v248 = vld [vmem:[#allocation10 + $0x38] sm:$0xff]
    %v249 = vld [vmem:[#allocation10 + $0x40] sm:$0xff]
    %v250 = vld [vmem:[#allocation10 + $0x48] sm:$0xff]
    %v251 = vld [vmem:[#allocation10 + $0x50] sm:$0xff]
    %v252 = vld [vmem:[#allocation10 + $0x58] sm:$0xff]
    %v253 = vld [vmem:[#allocation10 + $0x60] sm:$0xff]
    %v254 = vld [vmem:[#allocation10 + $0x68] sm:$0xff]
    %v255 = vld [vmem:[#allocation10 + $0x70] sm:$0xff]
    %v256 = vld [vmem:[#allocation10 + $0x78] sm:$0xff]
    %v257 = vld [vmem:[#allocation11] sm:$0x1]
    %v259 = vlaneseq
    %v260 = vshrl.u32 %v259, 7
    %v261 = vsub.s32 0, %v260
    %v262 = vrot.slane %v257, %v261
    %264 = vmatprep.subr.mxu0 0.0
    %265 = vmatpush1.msra.mxu0 %v241
    %266 = vmatprep.subr.mxu0 0.0
    %267 = vmatpush1.msra.mxu0 %v242
    %268 = vmatprep.subr.mxu0 0.0
    %269 = vmatpush1.msra.mxu0 %v243
    %270 = vmatprep.subr.mxu0 0.0
    %271 = vmatpush1.msra.mxu0 %v244
    %272 = vmatprep.subr.mxu0 0.0
    %273 = vmatpush1.msra.mxu0 %v245
    %274 = vmatprep.subr.mxu0 0.0
    %275 = vmatpush1.msra.mxu0 %v246
    %276 = vmatprep.subr.mxu0 0.0
    %277 = vmatpush1.msra.mxu0 %v247
    %278 = vmatprep.subr.mxu0 0.0
    %279 = vmatpush1.msra.mxu0 %v248
    %280 = vmatprep.subr.mxu0 0.0
    %281 = vmatpush1.msra.mxu0 %v249
    %282 = vmatprep.subr.mxu0 0.0
    %283 = vmatpush1.msra.mxu0 %v250
    %284 = vmatprep.subr.mxu0 0.0
    %285 = vmatpush1.msra.mxu0 %v251
    %286 = vmatprep.subr.mxu0 0.0
    %287 = vmatpush1.msra.mxu0 %v252
    %288 = vmatprep.subr.mxu0 0.0
    %289 = vmatpush1.msra.mxu0 %v253
    %290 = vmatprep.subr.mxu0 0.0
    %291 = vmatpush1.msra.mxu0 %v254
    %292 = vmatprep.subr.mxu0 0.0
    %293 = vmatpush1.msra.mxu0 %v255
    %294 = vmatprep.subr.mxu0 0.0
    %295 = vmatpush1.msra.mxu0 %v256
    %296 = vmatprep.subr.mxu0 0.0
    %297 = vmatpush1.msra.mxu0 0.0
    %298 = vmatprep.subr.mxu0 0.0
    %299 = vmatpush1.msra.mxu0 0.0
    %300 = vmatprep.subr.mxu0 0.0
    %301 = vmatpush1.msra.mxu0 0.0
    %302 = vmatprep.subr.mxu0 0.0
    %303 = vmatpush1.msra.mxu0 0.0
    %304 = vmatprep.subr.mxu0 0.0
    %305 = vmatpush1.msra.mxu0 0.0
    %306 = vmatprep.subr.mxu0 0.0
    %307 = vmatpush1.msra.mxu0 0.0
    %308 = vmatprep.subr.mxu0 0.0
    %309 = vmatpush1.msra.mxu0 0.0
    %310 = vmatprep.subr.mxu0 0.0
    %311 = vmatpush1.msra.mxu0 0.0
    %312 = vmatprep.subr.mxu0 0.0
    %313 = vmatpush1.msra.mxu0 0.0
    %314 = vmatprep.subr.mxu0 0.0
    %315 = vmatpush1.msra.mxu0 0.0
    %316 = vmatprep.subr.mxu0 0.0
    %317 = vmatpush1.msra.mxu0 0.0
    %318 = vmatprep.subr.mxu0 0.0
    %319 = vmatpush1.msra.mxu0 0.0
    %320 = vmatprep.subr.mxu0 0.0
    %321 = vmatpush1.msra.mxu0 0.0
    %322 = vmatprep.subr.mxu0 0.0
    %323 = vmatpush1.msra.mxu0 0.0
    %324 = vmatprep.subr.mxu0 0.0
    %325 = vmatpush1.msra.mxu0 0.0
    %326 = vmatprep.subr.mxu0 0.0
    %327 = vmatpush1.msra.mxu0 0.0
    %328 = vmatprep.mubr.f32.mxu0 0.0
    %329 = vmatmul.mubr.f32.gmra.mrb[0].mxu0 %v240
    %v330 = vpop.f32.mrb[0].mxu0
    %v331 = vadd.f32 %v262, %v330
    %v332 = vpop.f32.mrb[0].mxu0
    %333 = vdwg.mxu0
    %v334 = vmax.f32 %v331, 0.0
    %v335 = vld [vmem:[#allocation13] sm:$0xff]
    %v336 = vld [vmem:[#allocation13 + $0x8] sm:$0xff]
    %v337 = vld [vmem:[#allocation13 + $0x10] sm:$0xff]
    %v338 = vld [vmem:[#allocation13 + $0x18] sm:$0xff]
    %v339 = vld [vmem:[#allocation13 + $0x20] sm:$0xff]
    %v340 = vld [vmem:[#allocation13 + $0x28] sm:$0xff]
    %v341 = vld [vmem:[#allocation13 + $0x30] sm:$0xff]
    %v342 = vld [vmem:[#allocation13 + $0x38] sm:$0xff]
    %v343 = vld [vmem:[#allocation13 + $0x40] sm:$0xff]
    %v344 = vld [vmem:[#allocation13 + $0x48] sm:$0xff]
    %v345 = vld [vmem:[#allocation13 + $0x50] sm:$0xff]
    %v346 = vld [vmem:[#allocation13 + $0x58] sm:$0xff]
    %v347 = vld [vmem:[#allocation13 + $0x60] sm:$0xff]
    %v348 = vld [vmem:[#allocation13 + $0x68] sm:$0xff]
    %v349 = vld [vmem:[#allocation13 + $0x70] sm:$0xff]
    %v350 = vld [vmem:[#allocation13 + $0x78] sm:$0xff]
    %v351 = vld [vmem:[#allocation14] sm:$0x1]
    %v353 = vlaneseq
    %v354 = vshrl.u32 %v353, 7
    %v355 = vsub.s32 0, %v354
    %v356 = vrot.slane %v351, %v355
    %358 = vmatprep.subr.mxu0 0.0
    %359 = vmatpush1.msra.mxu0 %v335
    %360 = vmatprep.subr.mxu0 0.0
    %361 = vmatpush1.msra.mxu0 %v336
    %362 = vmatprep.subr.mxu0 0.0
    %363 = vmatpush1.msra.mxu0 %v337
    %364 = vmatprep.subr.mxu0 0.0
    %365 = vmatpush1.msra.mxu0 %v338
    %366 = vmatprep.subr.mxu0 0.0
    %367 = vmatpush1.msra.mxu0 %v339
    %368 = vmatprep.subr.mxu0 0.0
    %369 = vmatpush1.msra.mxu0 %v340
    %370 = vmatprep.subr.mxu0 0.0
    %371 = vmatpush1.msra.mxu0 %v341
    %372 = vmatprep.subr.mxu0 0.0
    %373 = vmatpush1.msra.mxu0 %v342
    %374 = vmatprep.subr.mxu0 0.0
    %375 = vmatpush1.msra.mxu0 %v343
    %376 = vmatprep.subr.mxu0 0.0
    %377 = vmatpush1.msra.mxu0 %v344
    %378 = vmatprep.subr.mxu0 0.0
    %379 = vmatpush1.msra.mxu0 %v345
    %380 = vmatprep.subr.mxu0 0.0
    %381 = vmatpush1.msra.mxu0 %v346
    %382 = vmatprep.subr.mxu0 0.0
    %383 = vmatpush1.msra.mxu0 %v347
    %384 = vmatprep.subr.mxu0 0.0
    %385 = vmatpush1.msra.mxu0 %v348
    %386 = vmatprep.subr.mxu0 0.0
    %387 = vmatpush1.msra.mxu0 %v349
    %388 = vmatprep.subr.mxu0 0.0
    %389 = vmatpush1.msra.mxu0 %v350
    %390 = vmatprep.subr.mxu0 0.0
    %391 = vmatpush1.msra.mxu0 0.0
    %392 = vmatprep.subr.mxu0 0.0
    %393 = vmatpush1.msra.mxu0 0.0
    %394 = vmatprep.subr.mxu0 0.0
    %395 = vmatpush1.msra.mxu0 0.0
    %396 = vmatprep.subr.mxu0 0.0
    %397 = vmatpush1.msra.mxu0 0.0
    %398 = vmatprep.subr.mxu0 0.0
    %399 = vmatpush1.msra.mxu0 0.0
    %400 = vmatprep.subr.mxu0 0.0
    %401 = vmatpush1.msra.mxu0 0.0
    %402 = vmatprep.subr.mxu0 0.0
    %403 = vmatpush1.msra.mxu0 0.0
    %404 = vmatprep.subr.mxu0 0.0
    %405 = vmatpush1.msra.mxu0 0.0
    %406 = vmatprep.subr.mxu0 0.0
    %407 = vmatpush1.msra.mxu0 0.0
    %408 = vmatprep.subr.mxu0 0.0
    %409 = vmatpush1.msra.mxu0 0.0
    %410 = vmatprep.subr.mxu0 0.0
    %411 = vmatpush1.msra.mxu0 0.0
    %412 = vmatprep.subr.mxu0 0.0
    %413 = vmatpush1.msra.mxu0 0.0
    %414 = vmatprep.subr.mxu0 0.0
    %415 = vmatpush1.msra.mxu0 0.0
    %416 = vmatprep.subr.mxu0 0.0
    %417 = vmatpush1.msra.mxu0 0.0
    %418 = vmatprep.subr.mxu0 0.0
    %419 = vmatpush1.msra.mxu0 0.0
    %420 = vmatprep.subr.mxu0 0.0
    %421 = vmatpush1.msra.mxu0 0.0
    %422 = vmatprep.mubr.f32.mxu0 0.0
    %423 = vmatmul.mubr.f32.gmra.mrb[0].mxu0 %v334
    %v424 = vpop.f32.mrb[0].mxu0
    %v425 = vadd.f32 %v356, %v424
    %v426 = vpop.f32.mrb[0].mxu0
    %427 = vdwg.mxu0
    %v428 = vld [vmem:[#allocation16] sm:$0x1]
    %v429 = vmax.f32 %v428, -20.0
    %v430 = vmin.f32 %v429, 2.0
    %v431 = vmul.f32 %v430, 1.442695
    %v432 = vpow.pop %v431
    %v433 = vmul.f32 %v430, -2.0
    %v434 = vmul.f32 %v433, 1.442695
    %v435 = vpow.pop %v434
    %v436 = vmul.f32 %v435, 0.5
    %v437 = vld [vmem:[#allocation5] sm:$0xff]
    %v439 = vlaneseq
    %v440 = vshrl.u32 %v439, 7
    %v441 = vsub.s32 0, %v440
    %v442 = vrot.slane %v432, %v441
    %v444 = vmul.f32 %v442, %v437
    %v445 = vadd.f32 %v425, %v444
    %v446 = vmax.f32 %v445, -1.0
    %v447 = vmin.f32 %v446, 1.0
    %v448 = vsub.f32 %v447, %v425
    %v449 = vmul.f32 %v448, %v448
    %v450 = vsub.f32 0.0, %v449
    %v452 = vlaneseq
    %v453 = vshrl.u32 %v452, 7
    %v454 = vsub.s32 0, %v453
    %v455 = vrot.slane %v436, %v454
    %v457 = vmul.f32 %v450, %v455
    %v459 = vlaneseq
    %v460 = vshrl.u32 %v459, 7
    %v461 = vsub.s32 0, %v460
    %v462 = vrot.slane %v430, %v461
    %v464 = vsub.f32 %v457, %v462
    %v465 = vsub.f32 %v464, 0.9189385
    %v466 = vlaneseq
    %v467 = vshrl.u32 %v466, 7
    %v468 = vadd.s32 %v467, 8
    %v469 = vadd.s32 %v467, 16
    %v470 = vadd.s32 %v467, 24
    %v471 = vadd.s32 %v467, 32
    %v472 = vadd.s32 %v467, 40
    %v473 = vadd.s32 %v467, 48
    %v474 = vadd.s32 %v467, 56
    %v475 = vadd.s32 %v467, 64
    %v476 = vadd.s32 %v467, 72
    %v477 = vadd.s32 %v467, 80
    %v478 = vadd.s32 %v467, 88
    %v479 = vadd.s32 %v467, 96
    %v480 = vadd.s32 %v467, 104
    %v481 = vadd.s32 %v467, 112
    %v482 = vadd.s32 %v467, 120
    %vm483 = vcmp.lt.s32.totalorder %v467, 8
    %vm484 = vcmp.lt.s32.totalorder %v468, 8
    %vm485 = vcmp.lt.s32.totalorder %v469, 8
    %vm486 = vcmp.lt.s32.totalorder %v470, 8
    %vm487 = vcmp.lt.s32.totalorder %v471, 8
    %vm488 = vcmp.lt.s32.totalorder %v472, 8
    %vm489 = vcmp.lt.s32.totalorder %v473, 8
    %vm490 = vcmp.lt.s32.totalorder %v474, 8
    %vm491 = vcmp.lt.s32.totalorder %v475, 8
    %vm492 = vcmp.lt.s32.totalorder %v476, 8
    %vm493 = vcmp.lt.s32.totalorder %v477, 8
    %vm494 = vcmp.lt.s32.totalorder %v478, 8
    %vm495 = vcmp.lt.s32.totalorder %v479, 8
    %vm496 = vcmp.lt.s32.totalorder %v480, 8
    %vm497 = vcmp.lt.s32.totalorder %v481, 8
    %vm498 = vcmp.lt.s32.totalorder %v482, 8
    %v499 = vsel %vm483, 1, 0
    %v500 = vsel %vm484, 1, 0
    %v501 = vsel %vm485, 1, 0
    %v502 = vsel %vm486, 1, 0
    %v503 = vsel %vm487, 1, 0
    %v504 = vsel %vm488, 1, 0
    %v505 = vsel %vm489, 1, 0
    %v506 = vsel %vm490, 1, 0
    %v507 = vsel %vm491, 1, 0
    %v508 = vsel %vm492, 1, 0
    %v509 = vsel %vm493, 1, 0
    %v510 = vsel %vm494, 1, 0
    %v511 = vsel %vm495, 1, 0
    %v512 = vsel %vm496, 1, 0
    %v513 = vsel %vm497, 1, 0
    %v514 = vsel %vm498, 1, 0
    %v515 = vcvt.s32.f32 %v499
    %v516 = vcvt.s32.f32 %v500
    %v517 = vcvt.s32.f32 %v501
    %v518 = vcvt.s32.f32 %v502
    %v519 = vcvt.s32.f32 %v503
    %v520 = vcvt.s32.f32 %v504
    %v521 = vcvt.s32.f32 %v505
    %v522 = vcvt.s32.f32 %v506
    %v523 = vcvt.s32.f32 %v507
    %v524 = vcvt.s32.f32 %v508
    %v525 = vcvt.s32.f32 %v509
    %v526 = vcvt.s32.f32 %v510
    %v527 = vcvt.s32.f32 %v511
    %v528 = vcvt.s32.f32 %v512
    %v529 = vcvt.s32.f32 %v513
    %v530 = vcvt.s32.f32 %v514
    %531 = vmatprep.subr.mxu0 0.0
    %532 = vmatpush1.msra.mxu0 %v515
    %533 = vmatprep.subr.mxu0 0.0
    %534 = vmatpush1.msra.mxu0 %v516
    %535 = vmatprep.subr.mxu0 0.0
    %536 = vmatpush1.msra.mxu0 %v517
    %537 = vmatprep.subr.mxu0 0.0
    %538 = vmatpush1.msra.mxu0 %v518
    %539 = vmatprep.subr.mxu0 0.0
    %540 = vmatpush1.msra.mxu0 %v519
    %541 = vmatprep.subr.mxu0 0.0
    %542 = vmatpush1.msra.mxu0 %v520
    %543 = vmatprep.subr.mxu0 0.0
    %544 = vmatpush1.msra.mxu0 %v521
    %545 = vmatprep.subr.mxu0 0.0
    %546 = vmatpush1.msra.mxu0 %v522
    %547 = vmatprep.subr.mxu0 0.0
    %548 = vmatpush1.msra.mxu0 %v523
    %549 = vmatprep.subr.mxu0 0.0
    %550 = vmatpush1.msra.mxu0 %v524
    %551 = vmatprep.subr.mxu0 0.0
    %552 = vmatpush1.msra.mxu0 %v525
    %553 = vmatprep.subr.mxu0 0.0
    %554 = vmatpush1.msra.mxu0 %v526
    %555 = vmatprep.subr.mxu0 0.0
    %556 = vmatpush1.msra.mxu0 %v527
    %557 = vmatprep.subr.mxu0 0.0
    %558 = vmatpush1.msra.mxu0 %v528
    %559 = vmatprep.subr.mxu0 0.0
    %560 = vmatpush1.msra.mxu0 %v529
    %561 = vmatprep.subr.mxu0 0.0
    %562 = vmatpush1.msra.mxu0 %v530
    %563 = vmatprep.subr.mxu0 0.0
    %564 = vmatpush1.msra.mxu0 0.0
    %565 = vmatprep.subr.mxu0 0.0
    %566 = vmatpush1.msra.mxu0 0.0
    %567 = vmatprep.subr.mxu0 0.0
    %568 = vmatpush1.msra.mxu0 0.0
    %569 = vmatprep.subr.mxu0 0.0
    %570 = vmatpush1.msra.mxu0 0.0
    %571 = vmatprep.subr.mxu0 0.0
    %572 = vmatpush1.msra.mxu0 0.0
    %573 = vmatprep.subr.mxu0 0.0
    %574 = vmatpush1.msra.mxu0 0.0
    %575 = vmatprep.subr.mxu0 0.0
    %576 = vmatpush1.msra.mxu0 0.0
    %577 = vmatprep.subr.mxu0 0.0
    %578 = vmatpush1.msra.mxu0 0.0
    %579 = vmatprep.subr.mxu0 0.0
    %580 = vmatpush1.msra.mxu0 0.0
    %581 = vmatprep.subr.mxu0 0.0
    %582 = vmatpush1.msra.mxu0 0.0
    %583 = vmatprep.subr.mxu0 0.0
    %584 = vmatpush1.msra.mxu0 0.0
    %585 = vmatprep.subr.mxu0 0.0
    %586 = vmatpush1.msra.mxu0 0.0
    %587 = vmatprep.subr.mxu0 0.0
    %588 = vmatpush1.msra.mxu0 0.0
    %589 = vmatprep.subr.mxu0 0.0
    %590 = vmatpush1.msra.mxu0 0.0
    %591 = vmatprep.subr.mxu0 0.0
    %592 = vmatpush1.msra.mxu0 0.0
    %593 = vmatprep.subr.mxu0 0.0
    %594 = vmatpush1.msra.mxu0 0.0
    %595 = vmatprep.mubr.f32.mxu0 0.0
    %596 = vmatmul.mubr.f32.gmra.mrb[0].mxu0 %v465
    %v597 = vpop.f32.mrb[0].mxu0
    %v598 = vadd.f32 0.0, %v597
    %v599 = vpop.f32.mrb[0].mxu0
    %600 = vdwg.mxu0
    %601 = vst [vmem:[#allocation17] sm:$0xff] %v447
    %vm602 = vcmask 7168
    %603 = vst.msk [vmem:[#allocation18] sm:$0xff] %vm602, %v598
    // Predicated region
    $region74: #{tpu_custom_call.1} parent=1 // pred_check
      _
    $region75: #{tpu_custom_call.1} parent=1 // pred_check_branch
      %605 = sbr.rel (0) target = $region77
    $region76: #{tpu_custom_call.1} parent=1 // pred_region
      %s607 = ssub.s32 128, 128
      %608 = vsyncadd [#allocation4], %s607
      %s610 = sshll.u32 [#allocation17], 4
      %s611 = int_to_ptr.vmem [resolvable:$true] %s610
      %613 = dma.vmem_to_hbm [thread:$0]  %s611, 128, %s9, [#allocation4]
    $region77: #{tpu_custom_call.1} parent=1 // pred_fallthru
      _
    // Predicated region
    $region78: #{tpu_custom_call.1} parent=1 // pred_check
      _
    $region79: #{tpu_custom_call.1} parent=1 // pred_check_branch
      %615 = sbr.rel (0) target = $region81
    $region80: #{tpu_custom_call.1} parent=1 // pred_region
      %s617 = ssub.s32 128, 128
      %618 = vsyncadd [#allocation19], %s617
      %s620 = sshll.u32 [#allocation18], 4
      %s621 = int_to_ptr.vmem [resolvable:$true] %s620
      %623 = dma.vmem_to_hbm [thread:$0]  %s621, 128, %s10, [#allocation19]
    $region81: #{tpu_custom_call.1} parent=1 // pred_fallthru
      _
    // Predicated region
    $region82: #{tpu_custom_call.1} parent=1 // pred_check
      _
    $region83: #{tpu_custom_call.1} parent=1 // pred_check_branch
      %625 = sbr.rel (0) target = $region85
    $region84: #{tpu_custom_call.1} parent=1 // pred_region
      %626 = dma.done [#allocation4], 128
    $region85: #{tpu_custom_call.1} parent=1 // pred_fallthru
      _
    // Predicated region
    $region86: #{tpu_custom_call.1} parent=1 // pred_check
      _
    $region87: #{tpu_custom_call.1} parent=1 // pred_check_branch
      %628 = sbr.rel (0) target = $region89
    $region88: #{tpu_custom_call.1} parent=1 // pred_region
      %629 = dma.done [#allocation19], 128
    $region89: #{tpu_custom_call.1} parent=1 // pred_fallthru
      _
    %630 = vsyncpa [#allocation3], 1
    %631 = vsyncpa [#allocation6], 1
    %632 = vsyncpa [#allocation9], 1
    %633 = vsyncpa [#allocation12], 1
    %634 = vsyncpa [#allocation15], 1
    %635 = vsyncpa [#allocation4], 1
    %636 = vsyncpa [#allocation19], 1

</llo_original>
